<compile_context>
chip_gen: v7x
topology: tpu7x:2x2x1
jax: 0.10.0
libtpu: 0.0.40
codegen_flags: <defaults>
</compile_context>

<pallas_src>
import jax
import jax.numpy as jnp
from jax.experimental import pallas as pl
from jax.experimental.pallas import tpu as pltpu


def _round_up(n: int, m: int) -> int:
    return (n + m - 1) // m * m


def _device_tuning():
    kind = ""
    try:
        kind = jax.devices()[0].device_kind.lower()
    except Exception:
        pass
    if "v7" in kind:
        return dict(tn=512, ti_cap=256, vmem=56 * 1024 * 1024)
    if "v6" in kind:
        return dict(tn=1024, ti_cap=512, vmem=100 * 1024 * 1024)
    if "v5" in kind or "v4" in kind:
        return dict(tn=512, ti_cap=512, vmem=100 * 1024 * 1024)
    # Unknown chip: stay conservative on VMEM.
    return dict(tn=512, ti_cap=256, vmem=48 * 1024 * 1024)


def moe_kernel(flags_ref, fetch_ref,                 # SMEM (NT*E,) int32 each
               x_ref, w1_ref, b1_ref, w2_ref, b2_ref, wp_ref, bp_ref, rw_ref,
               o_ref, acc_ref, w_scr):
    n = pl.program_id(0)          # token tile
    e = pl.program_id(1)          # expert
    i = pl.program_id(2)          # intermediate tile
    n_e = pl.num_programs(1)
    n_i = pl.num_programs(2)

    @pl.when(jnp.logical_and(e == 0, i == 0))
    def _():
        acc_ref[...] = jnp.zeros_like(acc_ref)

    # Skip all compute if no token in this tile routes to expert e.
    @pl.when(flags_ref[n * n_e + e] > 0)
    def _():
        # Routing-weight column select hoisted to the first intermediate tile.
        @pl.when(i == 0)
        def _():
            rw = rw_ref[...]                                        # (TN, E) f32
            lane = jax.lax.broadcasted_iota(jnp.int32, rw.shape, 1)
            w_scr[...] = jnp.sum(jnp.where(lane == e, rw, 0.0),
                                 axis=1, keepdims=True)             # (TN, 1)
        w = w_scr[...]                                              # (TN, 1) f32

        x = x_ref[...]                                              # (TN, C) bf16
        # LLaMAMLP (intermediate slice i of expert e), f32 accumulation on MXU.
        h1 = jnp.dot(x, w1_ref[0], preferred_element_type=jnp.float32) + b1_ref[0]
        h2 = jnp.dot(x, w2_ref[0], preferred_element_type=jnp.float32) + b2_ref[0]
        # Fold the routing weight into the (TN, TI) tile (commutes with proj).
        h = (w * (h1 * jax.nn.sigmoid(h1))) * h2                    # f32
        acc_ref[...] += jnp.dot(h.astype(jnp.bfloat16), wp_ref[0],
                                preferred_element_type=jnp.float32)

        # proj bias exactly once per active expert, routing-weighted.
        @pl.when(i == 0)
        def _():
            acc_ref[...] += w * bp_ref[0]

    @pl.when(jnp.logical_and(e == n_e - 1, i == n_i - 1))
    def _():
        o_ref[...] = acc_ref[...].astype(o_ref.dtype)


def llama_moe_forward(x, params, n_expert_per_token):
    """x: (B, T, C). params: stacked expert weights + gate weight."""
    B, T, C = x.shape
    N = B * T

    gate_w = params["gate_w"]            # (E, C)
    w1, b1 = params["w1"], params["b1"]  # (E, C, I), (E, 1, I)
    w2, b2 = params["w2"], params["b2"]
    wp, bp = params["wp"], params["bp"]  # (E, I, C), (E, 1, C)
    E = gate_w.shape[0]
    I = w1.shape[-1]

    x2d = x.reshape(N, C)

    # ---- routing glue (tiny, plain JAX, kept in f32) ----
    router = x2d.astype(jnp.float32) @ gate_w.T.astype(jnp.float32)   # (N, E)
    top_vals, top_idx = jax.lax.top_k(router, n_expert_per_token)
    probs = jax.nn.softmax(top_vals, axis=1)                          # f32
    one_hot = jax.nn.one_hot(top_idx, E, dtype=jnp.float32)           # (N, k, E)
    rw = jnp.einsum("nk,nke->ne", probs, one_hot)                     # (N, E) f32

    tune = _device_tuning()

    # ---- intermediate tiling (pad I so TI divides it and is MXU-aligned) ----
    ti_cap = tune["ti_cap"]
    if I <= ti_cap:
        TI, I_pad = I, I
    else:
        TI = ti_cap
        I_pad = _round_up(I, TI)
    IT = I_pad // TI

    # ---- token tiling, shrunk to fit the per-chip VMEM budget ----
    out_bytes = jnp.dtype(x.dtype).itemsize
    TN = min(tune["tn"], _round_up(N, 8))

    def _vmem_est(tn, ti):
        return (2 * tn * C * 2                 # x (bf16, double buffered)
                + tn * C * 4                   # f32 accumulator scratch
                + 2 * tn * C * out_bytes       # output (double buffered)
                + 2 * 3 * C * ti * 2           # w1/w2/wp tiles (bf16, 2 bufs)
                + 2 * (2 * ti + 2 * C) * 4     # bias tiles
                + 2 * tn * E * 4 + tn * 4      # rw tile + w scratch
                + 4 * tn * ti * 4)             # h1/h2/h temporaries

    while TN > 256 and _vmem_est(TN, TI) > int(0.8 * tune["vmem"]):
        TN = max(256, _round_up(TN // 2, 8))

    Np = _round_up(N, TN)
    NT = Np // TN

    if Np != N:
        x2d = jnp.pad(x2d, ((0, Np - N), (0, 0)))
        rw = jnp.pad(rw, ((0, Np - N), (0, 0)))

    if I_pad != I:
        dI = I_pad - I
        w1 = jnp.pad(w1, ((0, 0), (0, 0), (0, dI)))
        w2 = jnp.pad(w2, ((0, 0), (0, 0), (0, dI)))
        b1 = jnp.pad(b1, ((0, 0), (0, 0), (0, dI)))
        b2 = jnp.pad(b2, ((0, 0), (0, 0), (0, dI)))
        wp = jnp.pad(wp, ((0, 0), (0, dI), (0, 0)))

    # ---- per-(token-tile, expert) activity flags + DMA-skip fetch table ----
    flags2d = (rw.reshape(NT, TN, E) > 0).any(axis=1)                 # (NT, E) bool
    active = flags2d.reshape(-1)                                      # (NT*E,)
    flags = active.astype(jnp.int32)
    P = NT * E
    pos_fwd = jnp.where(active, jnp.arange(P, dtype=jnp.int32), P)
    nxt = jax.lax.cummin(pos_fwd, axis=0, reverse=True)               # next active >= p
    pos_bwd = jnp.where(active, jnp.arange(P, dtype=jnp.int32), -1)
    prv = jax.lax.cummax(pos_bwd, axis=0)                             # last active <= p
    fetch_pos = jnp.where(nxt < P, nxt, jnp.maximum(prv, 0))
    fetch = (fetch_pos % E).astype(jnp.int32)                         # expert whose
    # weights stay resident (== e when active; next active expert otherwise).

    # bf16 operands for the MXU; biases / routing weights stay f32.
    xb = x2d.astype(jnp.bfloat16)
    w1b = w1.astype(jnp.bfloat16)
    w2b = w2.astype(jnp.bfloat16)
    wpb = wp.astype(jnp.bfloat16)
    b1f = b1.astype(jnp.float32)
    b2f = b2.astype(jnp.float32)
    bpf = bp.astype(jnp.float32)

    # index_maps: for inactive (n, e) return the next-active expert's block with
    # a constant intermediate index -> block index unchanged across iterations
    # -> Pallas issues no weight DMA for skipped experts.
    def x_map(n, e, i, flags_r, fetch_r):
        return (n, 0)

    def rw_map(n, e, i, flags_r, fetch_r):
        return (n, 0)

    def out_map(n, e, i, flags_r, fetch_r):
        return (n, 0)

    def w12_map(n, e, i, flags_r, fetch_r):
        p = n * E + e
        return (fetch_r[p], 0, i * flags_r[p])

    def wp_map(n, e, i, flags_r, fetch_r):
        p = n * E + e
        return (fetch_r[p], i * flags_r[p], 0)

    def bp_map(n, e, i, flags_r, fetch_r):
        return (fetch_r[n * E + e], 0, 0)

    out = pl.pallas_call(
        moe_kernel,
        out_shape=jax.ShapeDtypeStruct((Np, C), x.dtype),
        grid_spec=pltpu.PrefetchScalarGridSpec(
            num_scalar_prefetch=2,
            grid=(NT, E, IT),
            in_specs=[
                pl.BlockSpec((TN, C), x_map),          # x
                pl.BlockSpec((1, C, TI), w12_map),     # w1[e]
                pl.BlockSpec((1, 1, TI), w12_map),     # b1[e]
                pl.BlockSpec((1, C, TI), w12_map),     # w2[e]
                pl.BlockSpec((1, 1, TI), w12_map),     # b2[e]
                pl.BlockSpec((1, TI, C), wp_map),      # wp[e]
                pl.BlockSpec((1, 1, C), bp_map),       # bp[e]
                pl.BlockSpec((TN, E), rw_map),         # routing weights tile
            ],
            out_specs=pl.BlockSpec((TN, C), out_map),
            scratch_shapes=[pltpu.VMEM((TN, C), jnp.float32),   # accumulator
                            pltpu.VMEM((TN, 1), jnp.float32)],  # rw column
        ),
        compiler_params=pltpu.CompilerParams(
            dimension_semantics=("parallel", "arbitrary", "arbitrary"),
            vmem_limit_bytes=tune["vmem"]),
    )(flags, fetch, xb, w1b, b1f, w2b, b2f, wpb, bpf, rw)

    return out[:N].reshape(B, T, C)


def reference_forward(x, params, n_expert_per_token):
    """Pure-JAX f32 dense reference mirroring the PyTorch scatter loop."""
    B, T, C = x.shape
    N = B * T
    x2d = x.reshape(N, C).astype(jnp.float32)
    E = params["gate_w"].shape[0]

    router = x2d @ params["gate_w"].T.astype(jnp.float32)
    top_vals, top_idx = jax.lax.top_k(router, n_expert_per_token)
    probs = jax.nn.softmax(top_vals, axis=1)
    rw = jnp.einsum("nk,nke->ne", probs,
                    jax.nn.one_hot(top_idx, E, dtype=jnp.float32))

    y = jnp.zeros((N, C), jnp.float32)
    for e in range(E):
        h1 = x2d @ params["w1"][e] + params["b1"][e]
        h2 = x2d @ params["w2"][e] + params["b2"][e]
        he = (h1 * jax.nn.sigmoid(h1)) * h2
        ye = he @ params["wp"][e] + params["bp"][e]
        y += rw[:, e:e + 1] * ye
    return y.reshape(B, T, C).astype(x.dtype)


if __name__ == "__main__":
    # Small config consistent with the module: n_embd=32, intermediate=64,
    # n_expert=4, n_expert_per_token=2, bias=True.
    B, T, C, I, E, K = 2, 8, 32, 64, 4, 2

    key = jax.random.PRNGKey(0)
    ks = jax.random.split(key, 9)
    scale = 0.05
    params = {
        "gate_w": scale * jax.random.normal(ks[0], (E, C), jnp.float32),
        "w1": scale * jax.random.normal(ks[1], (E, C, I), jnp.float32),
        "b1": scale * jax.random.normal(ks[2], (E, 1, I), jnp.float32),
        "w2": scale * jax.random.normal(ks[3], (E, C, I), jnp.float32),
        "b2": scale * jax.random.normal(ks[4], (E, 1, I), jnp.float32),
        "wp": scale * jax.random.normal(ks[5], (E, I, C), jnp.float32),
        "bp": scale * jax.random.normal(ks[6], (E, 1, C), jnp.float32),
    }
    x = jax.random.normal(ks[7], (B, T, C), jnp.float32)

    out = llama_moe_forward(x, params, K)
    out = jax.block_until_ready(out)

    ref = reference_forward(x, params, K)
    err = float(jnp.max(jnp.abs(out - ref)))
    # bf16 MXU inputs -> small numerical difference vs the f32 reference.
    assert err < 5e-3, f"mismatch vs reference, max abs err = {err}"

    print("KERNEL_OK")
</pallas_src>

<mosaic_0001>
module attributes {stable_mosaic.version = 11 : i64} {
  func.func @moe_kernel(%arg0: i32, %arg1: i32, %arg2: i32, %arg3: memref<4xi32, #tpu.memory_space<smem>>, %arg4: memref<4xi32, #tpu.memory_space<smem>>, %arg5: memref<16x32xbf16, #tpu.memory_space<vmem>>, %arg6: memref<1x32x64xbf16, #tpu.memory_space<vmem>>, %arg7: memref<1x1x64xf32, #tpu.memory_space<vmem>>, %arg8: memref<1x32x64xbf16, #tpu.memory_space<vmem>>, %arg9: memref<1x1x64xf32, #tpu.memory_space<vmem>>, %arg10: memref<1x64x32xbf16, #tpu.memory_space<vmem>>, %arg11: memref<1x1x32xf32, #tpu.memory_space<vmem>>, %arg12: memref<16x4xf32, #tpu.memory_space<vmem>>, %arg13: memref<16x32xf32, #tpu.memory_space<vmem>>, %arg14: memref<16x32xf32, #tpu.memory_space<vmem>>, %arg15: memref<16x1xf32, #tpu.memory_space<vmem>>) attributes {dimension_semantics = [#tpu.dimension_semantics<parallel>, #tpu.dimension_semantics<arbitrary>, #tpu.dimension_semantics<arbitrary>], iteration_bounds = array<i64: 1, 4, 1>, scalar_prefetch = 2 : i64, scratch_operands = 2 : i64, tpu.core_type = #tpu.core_type<tc>, window_params = [{transform_indices = @transform_0, window_bounds = array<i64: 16, 32>}, {transform_indices = @transform_1, window_bounds = array<i64: 1, 32, 64>}, {transform_indices = @transform_2, window_bounds = array<i64: 1, 1, 64>}, {transform_indices = @transform_3, window_bounds = array<i64: 1, 32, 64>}, {transform_indices = @transform_4, window_bounds = array<i64: 1, 1, 64>}, {transform_indices = @transform_5, window_bounds = array<i64: 1, 64, 32>}, {transform_indices = @transform_6, window_bounds = array<i64: 1, 1, 32>}, {transform_indices = @transform_7, window_bounds = array<i64: 16, 4>}, {transform_indices = @transform_8, window_bounds = array<i64: 16, 32>}]} {
    %c0_i32 = arith.constant 0 : i32
    %0 = arith.cmpi eq, %arg1, %c0_i32 : i32
    %c0_i32_0 = arith.constant 0 : i32
    %1 = arith.cmpi eq, %arg2, %c0_i32_0 : i32
    %2 = arith.andi %0, %1 : i1
    %3 = arith.extui %2 : i1 to i32
    %c0_i32_1 = arith.constant 0 : i32
    %4 = arith.cmpi ne, %3, %c0_i32_1 : i32
    scf.if %4 {
      %cst = arith.constant 0.000000e+00 : f32
      %17 = vector.broadcast %cst : f32 to vector<16x32xf32>
      %c0 = arith.constant 0 : index
      %c0_6 = arith.constant 0 : index
      %18 = vector.load %arg14[%c0, %c0_6] : memref<16x32xf32, #tpu.memory_space<vmem>>, vector<16x32xf32>
      tpu.vector_store %arg14[%c0, %c0_6], %17 {strides = array<i32>} : memref<16x32xf32, #tpu.memory_space<vmem>>, vector<16x32xf32>,
    } else {
    }
    %c4_i32 = arith.constant 4 : i32
    %5 = arith.muli %arg0, %c4_i32 : i32
    %6 = arith.addi %5, %arg1 : i32
    %7 = arith.index_cast %6 : i32 to index
    %8 = memref.load %arg3[%7] : memref<4xi32, #tpu.memory_space<smem>>
    %c0_i32_2 = arith.constant 0 : i32
    %9 = arith.cmpi sgt, %8, %c0_i32_2 : i32
    %10 = arith.extui %9 : i1 to i32
    %c0_i32_3 = arith.constant 0 : i32
    %11 = arith.cmpi ne, %10, %c0_i32_3 : i32
    scf.if %11 {
      %c0_i32_6 = arith.constant 0 : i32
      %17 = arith.cmpi eq, %arg2, %c0_i32_6 : i32
      %18 = arith.extui %17 : i1 to i32
      %c0_i32_7 = arith.constant 0 : i32
      %19 = arith.cmpi ne, %18, %c0_i32_7 : i32
      scf.if %19 {
        %c0_35 = arith.constant 0 : index
        %c0_36 = arith.constant 0 : index
        %55 = vector.load %arg12[%c0_35, %c0_36] : memref<16x4xf32, #tpu.memory_space<vmem>>, vector<16x4xf32>
        %56 = tpu.iota {dimensions = array<i32: 1>} : vector<16x4xi32>
        %57 = vector.broadcast %arg1 : i32 to vector<16x4xi32>
        %58 = arith.cmpi eq, %56, %57 : vector<16x4xi32>
        %cst_37 = arith.constant 0.000000e+00 : f32
        %59 = vector.broadcast %cst_37 : f32 to vector<16x4xf32>
        %60 = arith.select %58, %55, %59 : vector<16x4xi1>, vector<16x4xf32>
        %cst_38 = arith.constant dense<0.000000e+00> : vector<16xf32>
        %61 = vector.multi_reduction <add>, %60, %cst_38 [1] : vector<16x4xf32> to vector<16xf32>
        %62 = vector.shape_cast %61 : vector<16xf32> to vector<16x1xf32>
        %c0_39 = arith.constant 0 : index
        %c0_40 = arith.constant 0 : index
        %63 = vector.load %arg15[%c0_39, %c0_40] : memref<16x1xf32, #tpu.memory_space<vmem>>, vector<16x1xf32>
        tpu.vector_store %arg15[%c0_39, %c0_40], %62 {strides = array<i32>} : memref<16x1xf32, #tpu.memory_space<vmem>>, vector<16x1xf32>,
      } else {
      }
      %c0 = arith.constant 0 : index
      %c0_8 = arith.constant 0 : index
      %20 = vector.load %arg15[%c0, %c0_8] : memref<16x1xf32, #tpu.memory_space<vmem>>, vector<16x1xf32>
      %c0_9 = arith.constant 0 : index
      %c0_10 = arith.constant 0 : index
      %21 = vector.load %arg5[%c0_9, %c0_10] : memref<16x32xbf16, #tpu.memory_space<vmem>>, vector<16x32xbf16>
      %c0_11 = arith.constant 0 : index
      %c0_12 = arith.constant 0 : index
      %c0_13 = arith.constant 0 : index
      %22 = vector.load %arg6[%c0_11, %c0_12, %c0_13] : memref<1x32x64xbf16, #tpu.memory_space<vmem>>, vector<1x32x64xbf16>
      %23 = vector.shape_cast %22 : vector<1x32x64xbf16> to vector<32x64xbf16>
      %cst = arith.constant dense<0.000000e+00> : vector<16x64xf32>
      %24 = tpu.matmul %21, %23, %cst {dimension_numbers = #tpu.dot_dimension_numbers<[1], [0], [0], [1], [0, 0, 1, 1], [], []>} : vector<16x32xbf16>, vector<32x64xbf16>, vector<16x64xf32> -> vector<16x64xf32>
      %c0_14 = arith.constant 0 : index
      %c0_15 = arith.constant 0 : index
      %c0_16 = arith.constant 0 : index
      %25 = vector.load %arg7[%c0_14, %c0_15, %c0_16] : memref<1x1x64xf32, #tpu.memory_space<vmem>>, vector<1x1x64xf32>
      %26 = vector.shape_cast %25 : vector<1x1x64xf32> to vector<1x64xf32>
      %27 = vector.broadcast %26 : vector<1x64xf32> to vector<16x64xf32>
      %28 = arith.addf %24, %27 : vector<16x64xf32>
      %c0_17 = arith.constant 0 : index
      %c0_18 = arith.constant 0 : index
      %c0_19 = arith.constant 0 : index
      %29 = vector.load %arg8[%c0_17, %c0_18, %c0_19] : memref<1x32x64xbf16, #tpu.memory_space<vmem>>, vector<1x32x64xbf16>
      %30 = vector.shape_cast %29 : vector<1x32x64xbf16> to vector<32x64xbf16>
      %cst_20 = arith.constant dense<0.000000e+00> : vector<16x64xf32>
      %31 = tpu.matmul %21, %30, %cst_20 {dimension_numbers = #tpu.dot_dimension_numbers<[1], [0], [0], [1], [0, 0, 1, 1], [], []>} : vector<16x32xbf16>, vector<32x64xbf16>, vector<16x64xf32> -> vector<16x64xf32>
      %c0_21 = arith.constant 0 : index
      %c0_22 = arith.constant 0 : index
      %c0_23 = arith.constant 0 : index
      %32 = vector.load %arg9[%c0_21, %c0_22, %c0_23] : memref<1x1x64xf32, #tpu.memory_space<vmem>>, vector<1x1x64xf32>
      %33 = vector.shape_cast %32 : vector<1x1x64xf32> to vector<1x64xf32>
      %34 = vector.broadcast %33 : vector<1x64xf32> to vector<16x64xf32>
      %35 = arith.addf %31, %34 : vector<16x64xf32>
      %36 = arith.negf %28 : vector<16x64xf32>
      %37 = math.exp %36 : vector<16x64xf32>
      %cst_24 = arith.constant 1.000000e+00 : f32
      %38 = vector.broadcast %cst_24 : f32 to vector<16x64xf32>
      %39 = arith.addf %38, %37 : vector<16x64xf32>
      %40 = arith.divf %38, %39 : vector<16x64xf32>
      %41 = arith.mulf %28, %40 : vector<16x64xf32>
      %42 = vector.broadcast %20 : vector<16x1xf32> to vector<16x64xf32>
      %43 = arith.mulf %42, %41 : vector<16x64xf32>
      %44 = arith.mulf %43, %35 : vector<16x64xf32>
      %c0_25 = arith.constant 0 : index
      %c0_26 = arith.constant 0 : index
      %45 = vector.load %arg14[%c0_25, %c0_26] : memref<16x32xf32, #tpu.memory_space<vmem>>, vector<16x32xf32>
      %46 = arith.truncf %44 : vector<16x64xf32> to vector<16x64xbf16>
      %c0_27 = arith.constant 0 : index
      %c0_28 = arith.constant 0 : index
      %c0_29 = arith.constant 0 : index
      %47 = vector.load %arg10[%c0_27, %c0_28, %c0_29] : memref<1x64x32xbf16, #tpu.memory_space<vmem>>, vector<1x64x32xbf16>
      %48 = vector.shape_cast %47 : vector<1x64x32xbf16> to vector<64x32xbf16>
      %cst_30 = arith.constant dense<0.000000e+00> : vector<16x32xf32>
      %49 = tpu.matmul %46, %48, %cst_30 {dimension_numbers = #tpu.dot_dimension_numbers<[1], [0], [0], [1], [0, 0, 1, 1], [], []>} : vector<16x64xbf16>, vector<64x32xbf16>, vector<16x32xf32> -> vector<16x32xf32>
      %50 = arith.addf %45, %49 : vector<16x32xf32>
      %c0_31 = arith.constant 0 : index
      %c0_32 = arith.constant 0 : index
      %51 = vector.load %arg14[%c0_31, %c0_32] : memref<16x32xf32, #tpu.memory_space<vmem>>, vector<16x32xf32>
      tpu.vector_store %arg14[%c0_31, %c0_32], %50 {strides = array<i32>} : memref<16x32xf32, #tpu.memory_space<vmem>>, vector<16x32xf32>,
      %c0_i32_33 = arith.constant 0 : i32
      %52 = arith.cmpi eq, %arg2, %c0_i32_33 : i32
      %53 = arith.extui %52 : i1 to i32
      %c0_i32_34 = arith.constant 0 : i32
      %54 = arith.cmpi ne, %53, %c0_i32_34 : i32
      scf.if %54 {
        %c0_35 = arith.constant 0 : index
        %c0_36 = arith.constant 0 : index
        %55 = vector.load %arg14[%c0_35, %c0_36] : memref<16x32xf32, #tpu.memory_space<vmem>>, vector<16x32xf32>
        %c0_37 = arith.constant 0 : index
        %c0_38 = arith.constant 0 : index
        %c0_39 = arith.constant 0 : index
        %56 = vector.load %arg11[%c0_37, %c0_38, %c0_39] : memref<1x1x32xf32, #tpu.memory_space<vmem>>, vector<1x1x32xf32>
        %57 = vector.shape_cast %56 : vector<1x1x32xf32> to vector<1x32xf32>
        %58 = vector.broadcast %20 : vector<16x1xf32> to vector<16x32xf32>
        %59 = vector.broadcast %57 : vector<1x32xf32> to vector<16x32xf32>
        %60 = arith.mulf %58, %59 : vector<16x32xf32>
        %61 = arith.addf %55, %60 : vector<16x32xf32>
        %c0_40 = arith.constant 0 : index
        %c0_41 = arith.constant 0 : index
        %62 = vector.load %arg14[%c0_40, %c0_41] : memref<16x32xf32, #tpu.memory_space<vmem>>, vector<16x32xf32>
        tpu.vector_store %arg14[%c0_40, %c0_41], %61 {strides = array<i32>} : memref<16x32xf32, #tpu.memory_space<vmem>>, vector<16x32xf32>,
      } else {
      }
    } else {
    }
    %c3_i32 = arith.constant 3 : i32
    %12 = arith.cmpi eq, %arg1, %c3_i32 : i32
    %c0_i32_4 = arith.constant 0 : i32
    %13 = arith.cmpi eq, %arg2, %c0_i32_4 : i32
    %14 = arith.andi %12, %13 : i1
    %15 = arith.extui %14 : i1 to i32
    %c0_i32_5 = arith.constant 0 : i32
    %16 = arith.cmpi ne, %15, %c0_i32_5 : i32
    scf.if %16 {
      %c0 = arith.constant 0 : index
      %c0_6 = arith.constant 0 : index
      %17 = vector.load %arg14[%c0, %c0_6] : memref<16x32xf32, #tpu.memory_space<vmem>>, vector<16x32xf32>
      %c0_7 = arith.constant 0 : index
      %c0_8 = arith.constant 0 : index
      %18 = vector.load %arg13[%c0_7, %c0_8] : memref<16x32xf32, #tpu.memory_space<vmem>>, vector<16x32xf32>
      tpu.vector_store %arg13[%c0_7, %c0_8], %17 {strides = array<i32>} : memref<16x32xf32, #tpu.memory_space<vmem>>, vector<16x32xf32>,
    } else {
    }
    return
  }
  func.func @transform_0(%arg0: i32, %arg1: i32, %arg2: i32, %arg3: memref<4xi32, #tpu.memory_space<smem>>, %arg4: memref<4xi32, #tpu.memory_space<smem>>) -> (i32, i32) {
    %c0_i32 = arith.constant 0 : i32
    %c0_i32_0 = arith.constant 0 : i32
    return %arg0, %c0_i32 : i32, i32
  }
  func.func @transform_1(%arg0: i32, %arg1: i32, %arg2: i32, %arg3: memref<4xi32, #tpu.memory_space<smem>>, %arg4: memref<4xi32, #tpu.memory_space<smem>>) -> (i32, i32, i32) {
    %c4_i32 = arith.constant 4 : i32
    %0 = arith.muli %arg0, %c4_i32 : i32
    %1 = arith.addi %0, %arg1 : i32
    %2 = arith.index_cast %1 : i32 to index
    %3 = memref.load %arg4[%2] : memref<4xi32, #tpu.memory_space<smem>>
    %4 = arith.index_cast %1 : i32 to index
    %5 = memref.load %arg3[%4] : memref<4xi32, #tpu.memory_space<smem>>
    %6 = arith.muli %arg2, %5 : i32
    %c0_i32 = arith.constant 0 : i32
    %c0_i32_0 = arith.constant 0 : i32
    return %3, %c0_i32, %6 : i32, i32, i32
  }
  func.func @transform_2(%arg0: i32, %arg1: i32, %arg2: i32, %arg3: memref<4xi32, #tpu.memory_space<smem>>, %arg4: memref<4xi32, #tpu.memory_space<smem>>) -> (i32, i32, i32) {
    %c4_i32 = arith.constant 4 : i32
    %0 = arith.muli %arg0, %c4_i32 : i32
    %1 = arith.addi %0, %arg1 : i32
    %2 = arith.index_cast %1 : i32 to index
    %3 = memref.load %arg4[%2] : memref<4xi32, #tpu.memory_space<smem>>
    %4 = arith.index_cast %1 : i32 to index
    %5 = memref.load %arg3[%4] : memref<4xi32, #tpu.memory_space<smem>>
    %6 = arith.muli %arg2, %5 : i32
    %c0_i32 = arith.constant 0 : i32
    %c0_i32_0 = arith.constant 0 : i32
    return %3, %c0_i32, %6 : i32, i32, i32
  }
  func.func @transform_3(%arg0: i32, %arg1: i32, %arg2: i32, %arg3: memref<4xi32, #tpu.memory_space<smem>>, %arg4: memref<4xi32, #tpu.memory_space<smem>>) -> (i32, i32, i32) {
    %c4_i32 = arith.constant 4 : i32
    %0 = arith.muli %arg0, %c4_i32 : i32
    %1 = arith.addi %0, %arg1 : i32
    %2 = arith.index_cast %1 : i32 to index
    %3 = memref.load %arg4[%2] : memref<4xi32, #tpu.memory_space<smem>>
    %4 = arith.index_cast %1 : i32 to index
    %5 = memref.load %arg3[%4] : memref<4xi32, #tpu.memory_space<smem>>
    %6 = arith.muli %arg2, %5 : i32
    %c0_i32 = arith.constant 0 : i32
    %c0_i32_0 = arith.constant 0 : i32
    return %3, %c0_i32, %6 : i32, i32, i32
  }
  func.func @transform_4(%arg0: i32, %arg1: i32, %arg2: i32, %arg3: memref<4xi32, #tpu.memory_space<smem>>, %arg4: memref<4xi32, #tpu.memory_space<smem>>) -> (i32, i32, i32) {
    %c4_i32 = arith.constant 4 : i32
    %0 = arith.muli %arg0, %c4_i32 : i32
    %1 = arith.addi %0, %arg1 : i32
    %2 = arith.index_cast %1 : i32 to index
    %3 = memref.load %arg4[%2] : memref<4xi32, #tpu.memory_space<smem>>
    %4 = arith.index_cast %1 : i32 to index
    %5 = memref.load %arg3[%4] : memref<4xi32, #tpu.memory_space<smem>>
    %6 = arith.muli %arg2, %5 : i32
    %c0_i32 = arith.constant 0 : i32
    %c0_i32_0 = arith.constant 0 : i32
    return %3, %c0_i32, %6 : i32, i32, i32
  }
  func.func @transform_5(%arg0: i32, %arg1: i32, %arg2: i32, %arg3: memref<4xi32, #tpu.memory_space<smem>>, %arg4: memref<4xi32, #tpu.memory_space<smem>>) -> (i32, i32, i32) {
    %c4_i32 = arith.constant 4 : i32
    %0 = arith.muli %arg0, %c4_i32 : i32
    %1 = arith.addi %0, %arg1 : i32
    %2 = arith.index_cast %1 : i32 to index
    %3 = memref.load %arg4[%2] : memref<4xi32, #tpu.memory_space<smem>>
    %4 = arith.index_cast %1 : i32 to index
    %5 = memref.load %arg3[%4] : memref<4xi32, #tpu.memory_space<smem>>
    %6 = arith.muli %arg2, %5 : i32
    %c0_i32 = arith.constant 0 : i32
    %c0_i32_0 = arith.constant 0 : i32
    return %3, %6, %c0_i32 : i32, i32, i32
  }
  func.func @transform_6(%arg0: i32, %arg1: i32, %arg2: i32, %arg3: memref<4xi32, #tpu.memory_space<smem>>, %arg4: memref<4xi32, #tpu.memory_space<smem>>) -> (i32, i32, i32) {
    %c4_i32 = arith.constant 4 : i32
    %0 = arith.muli %arg0, %c4_i32 : i32
    %1 = arith.addi %0, %arg1 : i32
    %2 = arith.index_cast %1 : i32 to index
    %3 = memref.load %arg4[%2] : memref<4xi32, #tpu.memory_space<smem>>
    %c0_i32 = arith.constant 0 : i32
    %c0_i32_0 = arith.constant 0 : i32
    %c0_i32_1 = arith.constant 0 : i32
    return %3, %c0_i32, %c0_i32_0 : i32, i32, i32
  }
  func.func @transform_7(%arg0: i32, %arg1: i32, %arg2: i32, %arg3: memref<4xi32, #tpu.memory_space<smem>>, %arg4: memref<4xi32, #tpu.memory_space<smem>>) -> (i32, i32) {
    %c0_i32 = arith.constant 0 : i32
    %c0_i32_0 = arith.constant 0 : i32
    return %arg0, %c0_i32 : i32, i32
  }
  func.func @transform_8(%arg0: i32, %arg1: i32, %arg2: i32, %arg3: memref<4xi32, #tpu.memory_space<smem>>, %arg4: memref<4xi32, #tpu.memory_space<smem>>) -> (i32, i32) {
    %c0_i32 = arith.constant 0 : i32
    %c0_i32_0 = arith.constant 0 : i32
    return %arg0, %c0_i32 : i32, i32
  }
}

</mosaic_0001>

<llo_original>
// kernel: tpu_custom_call.1
$region0: #{tpu_custom_call.1}
  #allocation0 [shape = 'u32[]', space=smem, size = 0x4, offset = 0x4, fixed_abs, tag = 'smem constant byte address 0x4 - core index']
  #allocation1 [shape = 'u32[144,128]{1,0:T(1,128)}', space=vmem, size = 0x12000, scoped, tag = 'internal scratch']
  #allocation2 [shape = 'f32[16,32]{1,0:T(8,128)}', space=vmem, size = 0x2000, scoped, tag = 'scratch operand']
  #allocation3 [shape = 'f32[16,1]{1,0:T(8,128)}', space=vmem, size = 0x2000, scoped, tag = 'scratch operand']
  #allocation4 [shape = 's32[1]{0}', space=sflag, size = 0x4, scoped, tag = 'scoped memory for tpu_custom_call.1']
  #allocation5 [shape = 'u8[512]{0}', space=smem, size = 0x200, scoped, tag = 'prefetched SMEM operand 0']
  #allocation6 [shape = 'u8[512]{0}', space=smem, size = 0x200, scoped, tag = 'prefetched SMEM operand 1']
  %s0 = inlined_call_operand.vmem [shape: s32[4], index: 0, kind: input, shape index: {}]
  %s1 = inlined_call_operand.vmem [shape: s32[4], index: 1, kind: input, shape index: {}]
  %s2 = inlined_call_operand.vmem [shape: bf16[16,32], index: 2, kind: input, shape index: {}]
  %s3 = inlined_call_operand.vmem [shape: bf16[4,32,64], index: 3, kind: input, shape index: {}]
  %s4 = inlined_call_operand.vmem [shape: f32[4,1,64], index: 4, kind: input, shape index: {}]
  %s5 = inlined_call_operand.vmem [shape: bf16[4,32,64], index: 5, kind: input, shape index: {}]
  %s6 = inlined_call_operand.vmem [shape: f32[4,1,64], index: 6, kind: input, shape index: {}]
  %s7 = inlined_call_operand.vmem [shape: bf16[4,64,32], index: 7, kind: input, shape index: {}]
  %s8 = inlined_call_operand.vmem [shape: f32[4,1,32], index: 8, kind: input, shape index: {}]
  %s9 = inlined_call_operand.vmem [shape: f32[16,4], index: 9, kind: input, shape index: {}]
  %s10 = inlined_call_operand.hbm [shape: f32[16,32], index: 10, kind: output, shape index: {}]
  %s11 = sld [smem:[#allocation0]]
  $region85: #{tpu_custom_call.1} parent=0
    _
  %s13 = ssub.s32 1, %s11
  %s14 = scalar_select 0, %s13, %s11
  %s15 = sshll.u32 %s0, 4
  %s16 = int_to_ptr.vmem [resolvable:$true] %s15
  %18 = dma.vmem_to_smem %s16, 16, [#allocation5], [#allocation4]
  %s19 = sshll.u32 %s1, 4
  %s20 = int_to_ptr.vmem [resolvable:$true] %s19
  %22 = dma.vmem_to_smem %s20, 16, [#allocation6], [#allocation4]
  %23 = dma.done [#allocation4], 32
  %24 = sfence
  $region1: #{tpu_custom_call.1} parent=0
    #allocation7 [shape = 'u8[8192]{0}', space=vmem, size = 0x2000, scoped, tag = 'output window, operand 0, single buffered']
    #allocation8 [shape = 's32[2]{0}', space=sflag, size = 0x8, scoped, tag = 'scoped memory for tpu_custom_call.1']
    %25 = vsyncpa [#allocation8], 0
    loop: start=0, step=1, limit=6
    $region2: #{tpu_custom_call.1} parent=1 // loop_pre_header
      _
    $region3: #{tpu_custom_call.1} parent=1 // loop_header
      %s27 = sphi 0, %s31
      %p28 = scmp.ge.s32.totalorder %s27, 6
      %s34 = sphi 0, %s53
      %s35 = sphi 0, %s49
      %s36 = sphi 0, %s45
      %s37 = sphi 0, %s34
      %s38 = sphi 0, %s35
      %s39 = sphi 0, %s36
      %s40 = sphi 0, %s37
      %s41 = sphi 0, %s38
      %s42 = sphi 0, %s39
      %s56 = sphi 0, %s58
      %s59 = sphi 0, %s56
      %s60 = sphi 0, %s59
      %s76 = sphi 0, %s60
      %s94 = sphi 0, %s96
      %s97 = sphi 0, %s94
      %s98 = sphi 0, %s97
      %s114 = sphi 0, %s98
      %s132 = sphi 0, %s134
      %s135 = sphi 0, %s132
      %s136 = sphi 0, %s135
      %s152 = sphi 0, %s136
      %s170 = sphi 0, %s172
      %s173 = sphi 0, %s170
      %s174 = sphi 0, %s173
      %s190 = sphi 0, %s174
      %s208 = sphi 0, %s210
      %s211 = sphi 0, %s208
      %s212 = sphi 0, %s211
      %s228 = sphi 0, %s212
      %s246 = sphi 0, %s248
      %s249 = sphi 0, %s246
      %s250 = sphi 0, %s249
      %s266 = sphi 0, %s250
      %s278 = sphi 0, %s280
      %s281 = sphi 0, %s278
      %s282 = sphi 0, %s281
      %s298 = sphi 0, %s282
      %s304 = sphi 0, %s306
      %s307 = sphi 0, %s304
      %s308 = sphi 0, %s307
      %s324 = sphi 0, %s308
      %s330 = sphi 0, %s332
      %s333 = sphi 0, %s330
      %s334 = sphi 0, %s333
      %s350 = sphi 0, %s334
    $region4: #{tpu_custom_call.1} parent=1 // loop_header_branch
      %30 = sbr.rel (%p28) target = $region8
    $region5: #{tpu_custom_call.1} parent=1 // loop_body
      %s32 = ssub.s32 %s27, 1
      %s33 = ssub.s32 %s27, 2
      %s43 = sadd.s32 1, %s36
      %p44 = scmp.ge.s32.totalorder %s43, 1
      %s45 = scalar_select %p44, 0, %s43
      %s46 = sadd.s32 1, %s35
      %s47 = scalar_select %p44, %s46, %s35
      %p48 = scmp.ge.s32.totalorder %s47, 4
      %s49 = scalar_select %p48, 0, %s47
      %s50 = sadd.s32 1, %s34
      %s51 = scalar_select %p48, %s50, %s34
      %p52 = scmp.ge.s32.totalorder %s51, 1
      %s53 = scalar_select %p52, 0, %s51
      %s54 = ssub.s32 %s34, %s53
      %p55 = scmp.eq.s32.totalorder %s54, 0
      %s57 = sadd.s32 %s56, 1
      %s58 = scalar_select %p55, %s56, %s57
      %p61 = pneg %p55
      %p62 = scmp.eq.s32.totalorder %s27, 3
      %p63 = por %p61, %p62
      %p64 = scmp.ne.s32.totalorder %s56, %s59
      %p65 = scmp.eq.s32.totalorder %s27, 0
      %p66 = por %p64, %p65
      %p67 = scmp.ne.s32.totalorder %s56, %s59
      %p68 = scmp.eq.s32.totalorder %s32, 3
      %p69 = por %p67, %p68
      %p70 = scmp.ne.s32.totalorder %s59, %s60
      %p71 = scmp.eq.s32.totalorder %s32, 0
      %p72 = por %p70, %p71
      %p73 = scmp.ne.s32.totalorder %s59, %s60
      %p74 = scmp.eq.s32.totalorder %s33, 3
      %p75 = por %p73, %p74
      %p77 = scmp.ne.s32.totalorder %s60, %s76
      %p78 = scmp.eq.s32.totalorder %s33, 0
      %p79 = por %p77, %p78
      %s80 = smul.u32 %s34, 4
      %s81 = sadd.s32 %s80, %s35
      %s82 = sld [smem:[#allocation6 + %s81]]
      %s83 = sld [smem:[#allocation5 + %s81]]
      %s84 = smul.u32 %s36, %s83
      %s85 = smul.u32 %s53, 4
      %s86 = sadd.s32 %s85, %s49
      %s87 = sld [smem:[#allocation6 + %s86]]
      %s88 = sld [smem:[#allocation5 + %s86]]
      %s89 = smul.u32 %s45, %s88
      %s90 = ssub.s32 %s82, %s87
      %s91 = ssub.s32 %s84, %s89
      %s92 = sor.u32 %s90, %s91
      %p93 = scmp.eq.s32.totalorder %s92, 0
      %s95 = sadd.s32 %s94, 1
      %s96 = scalar_select %p93, %s94, %s95
      %p99 = pneg %p93
      %p100 = scmp.eq.s32.totalorder %s27, 3
      %p101 = por %p99, %p100
      %p102 = scmp.ne.s32.totalorder %s94, %s97
      %p103 = scmp.eq.s32.totalorder %s27, 0
      %p104 = por %p102, %p103
      %p105 = scmp.ne.s32.totalorder %s94, %s97
      %p106 = scmp.eq.s32.totalorder %s32, 3
      %p107 = por %p105, %p106
      %p108 = scmp.ne.s32.totalorder %s97, %s98
      %p109 = scmp.eq.s32.totalorder %s32, 0
      %p110 = por %p108, %p109
      %p111 = scmp.ne.s32.totalorder %s97, %s98
      %p112 = scmp.eq.s32.totalorder %s33, 3
      %p113 = por %p111, %p112
      %p115 = scmp.ne.s32.totalorder %s98, %s114
      %p116 = scmp.eq.s32.totalorder %s33, 0
      %p117 = por %p115, %p116
      %s118 = smul.u32 %s34, 4
      %s119 = sadd.s32 %s118, %s35
      %s120 = sld [smem:[#allocation6 + %s119]]
      %s121 = sld [smem:[#allocation5 + %s119]]
      %s122 = smul.u32 %s36, %s121
      %s123 = smul.u32 %s53, 4
      %s124 = sadd.s32 %s123, %s49
      %s125 = sld [smem:[#allocation6 + %s124]]
      %s126 = sld [smem:[#allocation5 + %s124]]
      %s127 = smul.u32 %s45, %s126
      %s128 = ssub.s32 %s120, %s125
      %s129 = ssub.s32 %s122, %s127
      %s130 = sor.u32 %s128, %s129
      %p131 = scmp.eq.s32.totalorder %s130, 0
      %s133 = sadd.s32 %s132, 1
      %s134 = scalar_select %p131, %s132, %s133
      %p137 = pneg %p131
      %p138 = scmp.eq.s32.totalorder %s27, 3
      %p139 = por %p137, %p138
      %p140 = scmp.ne.s32.totalorder %s132, %s135
      %p141 = scmp.eq.s32.totalorder %s27, 0
      %p142 = por %p140, %p141
      %p143 = scmp.ne.s32.totalorder %s132, %s135
      %p144 = scmp.eq.s32.totalorder %s32, 3
      %p145 = por %p143, %p144
      %p146 = scmp.ne.s32.totalorder %s135, %s136
      %p147 = scmp.eq.s32.totalorder %s32, 0
      %p148 = por %p146, %p147
      %p149 = scmp.ne.s32.totalorder %s135, %s136
      %p150 = scmp.eq.s32.totalorder %s33, 3
      %p151 = por %p149, %p150
      %p153 = scmp.ne.s32.totalorder %s136, %s152
      %p154 = scmp.eq.s32.totalorder %s33, 0
      %p155 = por %p153, %p154
      %s156 = smul.u32 %s34, 4
      %s157 = sadd.s32 %s156, %s35
      %s158 = sld [smem:[#allocation6 + %s157]]
      %s159 = sld [smem:[#allocation5 + %s157]]
      %s160 = smul.u32 %s36, %s159
      %s161 = smul.u32 %s53, 4
      %s162 = sadd.s32 %s161, %s49
      %s163 = sld [smem:[#allocation6 + %s162]]
      %s164 = sld [smem:[#allocation5 + %s162]]
      %s165 = smul.u32 %s45, %s164
      %s166 = ssub.s32 %s158, %s163
      %s167 = ssub.s32 %s160, %s165
      %s168 = sor.u32 %s166, %s167
      %p169 = scmp.eq.s32.totalorder %s168, 0
      %s171 = sadd.s32 %s170, 1
      %s172 = scalar_select %p169, %s170, %s171
      %p175 = pneg %p169
      %p176 = scmp.eq.s32.totalorder %s27, 3
      %p177 = por %p175, %p176
      %p178 = scmp.ne.s32.totalorder %s170, %s173
      %p179 = scmp.eq.s32.totalorder %s27, 0
      %p180 = por %p178, %p179
      %p181 = scmp.ne.s32.totalorder %s170, %s173
      %p182 = scmp.eq.s32.totalorder %s32, 3
      %p183 = por %p181, %p182
      %p184 = scmp.ne.s32.totalorder %s173, %s174
      %p185 = scmp.eq.s32.totalorder %s32, 0
      %p186 = por %p184, %p185
      %p187 = scmp.ne.s32.totalorder %s173, %s174
      %p188 = scmp.eq.s32.totalorder %s33, 3
      %p189 = por %p187, %p188
      %p191 = scmp.ne.s32.totalorder %s174, %s190
      %p192 = scmp.eq.s32.totalorder %s33, 0
      %p193 = por %p191, %p192
      %s194 = smul.u32 %s34, 4
      %s195 = sadd.s32 %s194, %s35
      %s196 = sld [smem:[#allocation6 + %s195]]
      %s197 = sld [smem:[#allocation5 + %s195]]
      %s198 = smul.u32 %s36, %s197
      %s199 = smul.u32 %s53, 4
      %s200 = sadd.s32 %s199, %s49
      %s201 = sld [smem:[#allocation6 + %s200]]
      %s202 = sld [smem:[#allocation5 + %s200]]
      %s203 = smul.u32 %s45, %s202
      %s204 = ssub.s32 %s196, %s201
      %s205 = ssub.s32 %s198, %s203
      %s206 = sor.u32 %s204, %s205
      %p207 = scmp.eq.s32.totalorder %s206, 0
      %s209 = sadd.s32 %s208, 1
      %s210 = scalar_select %p207, %s208, %s209
      %p213 = pneg %p207
      %p214 = scmp.eq.s32.totalorder %s27, 3
      %p215 = por %p213, %p214
      %p216 = scmp.ne.s32.totalorder %s208, %s211
      %p217 = scmp.eq.s32.totalorder %s27, 0
      %p218 = por %p216, %p217
      %p219 = scmp.ne.s32.totalorder %s208, %s211
      %p220 = scmp.eq.s32.totalorder %s32, 3
      %p221 = por %p219, %p220
      %p222 = scmp.ne.s32.totalorder %s211, %s212
      %p223 = scmp.eq.s32.totalorder %s32, 0
      %p224 = por %p222, %p223
      %p225 = scmp.ne.s32.totalorder %s211, %s212
      %p226 = scmp.eq.s32.totalorder %s33, 3
      %p227 = por %p225, %p226
      %p229 = scmp.ne.s32.totalorder %s212, %s228
      %p230 = scmp.eq.s32.totalorder %s33, 0
      %p231 = por %p229, %p230
      %s232 = smul.u32 %s34, 4
      %s233 = sadd.s32 %s232, %s35
      %s234 = sld [smem:[#allocation6 + %s233]]
      %s235 = sld [smem:[#allocation5 + %s233]]
      %s236 = smul.u32 %s36, %s235
      %s237 = smul.u32 %s53, 4
      %s238 = sadd.s32 %s237, %s49
      %s239 = sld [smem:[#allocation6 + %s238]]
      %s240 = sld [smem:[#allocation5 + %s238]]
      %s241 = smul.u32 %s45, %s240
      %s242 = ssub.s32 %s234, %s239
      %s243 = ssub.s32 %s236, %s241
      %s244 = sor.u32 %s242, %s243
      %p245 = scmp.eq.s32.totalorder %s244, 0
      %s247 = sadd.s32 %s246, 1
      %s248 = scalar_select %p245, %s246, %s247
      %p251 = pneg %p245
      %p252 = scmp.eq.s32.totalorder %s27, 3
      %p253 = por %p251, %p252
      %p254 = scmp.ne.s32.totalorder %s246, %s249
      %p255 = scmp.eq.s32.totalorder %s27, 0
      %p256 = por %p254, %p255
      %p257 = scmp.ne.s32.totalorder %s246, %s249
      %p258 = scmp.eq.s32.totalorder %s32, 3
      %p259 = por %p257, %p258
      %p260 = scmp.ne.s32.totalorder %s249, %s250
      %p261 = scmp.eq.s32.totalorder %s32, 0
      %p262 = por %p260, %p261
      %p263 = scmp.ne.s32.totalorder %s249, %s250
      %p264 = scmp.eq.s32.totalorder %s33, 3
      %p265 = por %p263, %p264
      %p267 = scmp.ne.s32.totalorder %s250, %s266
      %p268 = scmp.eq.s32.totalorder %s33, 0
      %p269 = por %p267, %p268
      %s270 = smul.u32 %s34, 4
      %s271 = sadd.s32 %s270, %s35
      %s272 = sld [smem:[#allocation6 + %s271]]
      %s273 = smul.u32 %s53, 4
      %s274 = sadd.s32 %s273, %s49
      %s275 = sld [smem:[#allocation6 + %s274]]
      %s276 = ssub.s32 %s272, %s275
      %p277 = scmp.eq.s32.totalorder %s276, 0
      %s279 = sadd.s32 %s278, 1
      %s280 = scalar_select %p277, %s278, %s279
      %p283 = pneg %p277
      %p284 = scmp.eq.s32.totalorder %s27, 3
      %p285 = por %p283, %p284
      %p286 = scmp.ne.s32.totalorder %s278, %s281
      %p287 = scmp.eq.s32.totalorder %s27, 0
      %p288 = por %p286, %p287
      %p289 = scmp.ne.s32.totalorder %s278, %s281
      %p290 = scmp.eq.s32.totalorder %s32, 3
      %p291 = por %p289, %p290
      %p292 = scmp.ne.s32.totalorder %s281, %s282
      %p293 = scmp.eq.s32.totalorder %s32, 0
      %p294 = por %p292, %p293
      %p295 = scmp.ne.s32.totalorder %s281, %s282
      %p296 = scmp.eq.s32.totalorder %s33, 3
      %p297 = por %p295, %p296
      %p299 = scmp.ne.s32.totalorder %s282, %s298
      %p300 = scmp.eq.s32.totalorder %s33, 0
      %p301 = por %p299, %p300
      %s302 = ssub.s32 %s34, %s53
      %p303 = scmp.eq.s32.totalorder %s302, 0
      %s305 = sadd.s32 %s304, 1
      %s306 = scalar_select %p303, %s304, %s305
      %p309 = pneg %p303
      %p310 = scmp.eq.s32.totalorder %s27, 3
      %p311 = por %p309, %p310
      %p312 = scmp.ne.s32.totalorder %s304, %s307
      %p313 = scmp.eq.s32.totalorder %s27, 0
      %p314 = por %p312, %p313
      %p315 = scmp.ne.s32.totalorder %s304, %s307
      %p316 = scmp.eq.s32.totalorder %s32, 3
      %p317 = por %p315, %p316
      %p318 = scmp.ne.s32.totalorder %s307, %s308
      %p319 = scmp.eq.s32.totalorder %s32, 0
      %p320 = por %p318, %p319
      %p321 = scmp.ne.s32.totalorder %s307, %s308
      %p322 = scmp.eq.s32.totalorder %s33, 3
      %p323 = por %p321, %p322
      %p325 = scmp.ne.s32.totalorder %s308, %s324
      %p326 = scmp.eq.s32.totalorder %s33, 0
      %p327 = por %p325, %p326
      %s328 = ssub.s32 %s34, %s53
      %p329 = scmp.eq.s32.totalorder %s328, 0
      %s331 = sadd.s32 %s330, 1
      %s332 = scalar_select %p329, %s330, %s331
      %p335 = pneg %p329
      %p336 = scmp.eq.s32.totalorder %s27, 3
      %p337 = por %p335, %p336
      %p338 = scmp.ne.s32.totalorder %s330, %s333
      %p339 = scmp.eq.s32.totalorder %s27, 0
      %p340 = por %p338, %p339
      %p341 = scmp.ne.s32.totalorder %s330, %s333
      %p342 = scmp.eq.s32.totalorder %s32, 3
      %p343 = por %p341, %p342
      %p344 = scmp.ne.s32.totalorder %s333, %s334
      %p345 = scmp.eq.s32.totalorder %s32, 0
      %p346 = por %p344, %p345
      %p347 = scmp.ne.s32.totalorder %s333, %s334
      %p348 = scmp.eq.s32.totalorder %s33, 3
      %p349 = por %p347, %p348
      %p351 = scmp.ne.s32.totalorder %s334, %s350
      %p352 = scmp.eq.s32.totalorder %s33, 0
      %p353 = por %p351, %p352
      %p354 = scmp.le.s32.totalorder 1, %s27
      %p355 = scmp.lt.s32.totalorder %s27, 5
      %p356 = pnand %p354, %p355
      %p357 = pneg %p356
      // Predicated region
      $region9: #{tpu_custom_call.1} parent=5 // pred_check
        _
      $region10: #{tpu_custom_call.1} parent=5 // pred_check_branch
        %359 = sbr.rel (%p356) target = $region12
      $region11: #{tpu_custom_call.1} parent=5 // pred_region
        %s360 = ssub.s32 %s27, 1
        // Predicated region
        $region13: #{tpu_custom_call.1} parent=11 // pred_check
          %p361 = pneg %p72
        $region14: #{tpu_custom_call.1} parent=11 // pred_check_branch
          %363 = sbr.rel (%p361) target = $region16
        $region15: #{tpu_custom_call.1} parent=11 // pred_region
          %s364 = smul.u32 2, %s37
          %p365 = scmp.lt.s32.totalorder %s364, 1
          %s366 = scalar_select %p365, %s364, 1
          %s367 = smul.addr %s366, 4
          %s368 = scalar_lea.vmem %s2, %s367
          %s369 = smul.u32 2, %s37
        $region16: #{tpu_custom_call.1} parent=11 // pred_fallthru
          _
        // Predicated region
        $region17: #{tpu_custom_call.1} parent=11 // pred_check
          %p370 = pneg %p320
        $region18: #{tpu_custom_call.1} parent=11 // pred_check_branch
          %372 = sbr.rel (%p370) target = $region20
        $region19: #{tpu_custom_call.1} parent=11 // pred_region
          %s373 = smul.u32 2, %s37
          %p374 = scmp.lt.s32.totalorder %s373, 1
          %s375 = scalar_select %p374, %s373, 1
          %s376 = smul.addr %s375, 8
          %s377 = scalar_lea.vmem %s9, %s376
          %s378 = smul.u32 2, %s37
        $region20: #{tpu_custom_call.1} parent=11 // pred_fallthru
          _
      $region12: #{tpu_custom_call.1} parent=5 // pred_fallthru
        _
      %p379 = scmp.lt.s32.totalorder %s27, 4
      // Predicated region
      $region21: #{tpu_custom_call.1} parent=5 // pred_check
        %p380 = pneg %p379
      $region22: #{tpu_custom_call.1} parent=5 // pred_check_branch
        %382 = sbr.rel (%p380) target = $region24
      $region23: #{tpu_custom_call.1} parent=5 // pred_region
        // Predicated region
        $region25: #{tpu_custom_call.1} parent=23 // pred_check
          %p383 = pneg %p104
        $region26: #{tpu_custom_call.1} parent=23 // pred_check_branch
          %385 = sbr.rel (%p383) target = $region28
        $region27: #{tpu_custom_call.1} parent=23 // pred_region
          %s386 = smul.u32 %s34, 4
          %s387 = sadd.s32 %s386, %s35
          %s388 = sld [smem:[#allocation6 + %s387]]
          %s389 = sld [smem:[#allocation5 + %s387]]
          %s390 = smul.u32 %s36, %s389
          %p391 = scmp.lt.s32.totalorder %s388, 3
          %s392 = scalar_select %p391, %s388, 3
          %p393 = scmp.lt.s32.totalorder %s390, 0
          %s394 = scalar_select %p393, %s390, 0
          %s395 = smul.addr %s392, 4
          %s396 = sadd.s32 %s394, %s395
          %s397 = smul.addr %s396, 4
          %s398 = scalar_lea.vmem %s3, %s397
          %s399 = smul.u32 %s34, 4
          %s400 = sadd.s32 %s399, %s35
          %s401 = sld [smem:[#allocation6 + %s400]]
          %s402 = sld [smem:[#allocation5 + %s400]]
          %s403 = smul.u32 %s36, %s402
        $region28: #{tpu_custom_call.1} parent=23 // pred_fallthru
          _
        // Predicated region
        $region29: #{tpu_custom_call.1} parent=23 // pred_check
          %p404 = pneg %p142
        $region30: #{tpu_custom_call.1} parent=23 // pred_check_branch
          %406 = sbr.rel (%p404) target = $region32
        $region31: #{tpu_custom_call.1} parent=23 // pred_region
          %s407 = smul.u32 %s34, 4
          %s408 = sadd.s32 %s407, %s35
          %s409 = sld [smem:[#allocation6 + %s408]]
          %s410 = sld [smem:[#allocation5 + %s408]]
          %s411 = smul.u32 %s36, %s410
          %p412 = scmp.lt.s32.totalorder %s409, 3
          %s413 = scalar_select %p412, %s409, 3
          %p414 = scmp.lt.s32.totalorder %s411, 0
          %s415 = scalar_select %p414, %s411, 0
          %s416 = sadd.s32 %s415, %s413
          %s417 = scalar_lea.vmem %s4, %s416
          %s418 = smul.u32 %s34, 4
          %s419 = sadd.s32 %s418, %s35
          %s420 = sld [smem:[#allocation6 + %s419]]
          %s421 = sld [smem:[#allocation5 + %s419]]
          %s422 = smul.u32 %s36, %s421
        $region32: #{tpu_custom_call.1} parent=23 // pred_fallthru
          _
        // Predicated region
        $region33: #{tpu_custom_call.1} parent=23 // pred_check
          %p423 = pneg %p180
        $region34: #{tpu_custom_call.1} parent=23 // pred_check_branch
          %425 = sbr.rel (%p423) target = $region36
        $region35: #{tpu_custom_call.1} parent=23 // pred_region
          %s426 = smul.u32 %s34, 4
          %s427 = sadd.s32 %s426, %s35
          %s428 = sld [smem:[#allocation6 + %s427]]
          %s429 = sld [smem:[#allocation5 + %s427]]
          %s430 = smul.u32 %s36, %s429
          %p431 = scmp.lt.s32.totalorder %s428, 3
          %s432 = scalar_select %p431, %s428, 3
          %p433 = scmp.lt.s32.totalorder %s430, 0
          %s434 = scalar_select %p433, %s430, 0
          %s435 = smul.addr %s432, 4
          %s436 = sadd.s32 %s434, %s435
          %s437 = smul.addr %s436, 4
          %s438 = scalar_lea.vmem %s5, %s437
          %s439 = smul.u32 %s34, 4
          %s440 = sadd.s32 %s439, %s35
          %s441 = sld [smem:[#allocation6 + %s440]]
          %s442 = sld [smem:[#allocation5 + %s440]]
          %s443 = smul.u32 %s36, %s442
        $region36: #{tpu_custom_call.1} parent=23 // pred_fallthru
          _
        // Predicated region
        $region37: #{tpu_custom_call.1} parent=23 // pred_check
          %p444 = pneg %p218
        $region38: #{tpu_custom_call.1} parent=23 // pred_check_branch
          %446 = sbr.rel (%p444) target = $region40
        $region39: #{tpu_custom_call.1} parent=23 // pred_region
          %s447 = smul.u32 %s34, 4
          %s448 = sadd.s32 %s447, %s35
          %s449 = sld [smem:[#allocation6 + %s448]]
          %s450 = sld [smem:[#allocation5 + %s448]]
          %s451 = smul.u32 %s36, %s450
          %p452 = scmp.lt.s32.totalorder %s449, 3
          %s453 = scalar_select %p452, %s449, 3
          %p454 = scmp.lt.s32.totalorder %s451, 0
          %s455 = scalar_select %p454, %s451, 0
          %s456 = sadd.s32 %s455, %s453
          %s457 = scalar_lea.vmem %s6, %s456
          %s458 = smul.u32 %s34, 4
          %s459 = sadd.s32 %s458, %s35
          %s460 = sld [smem:[#allocation6 + %s459]]
          %s461 = sld [smem:[#allocation5 + %s459]]
          %s462 = smul.u32 %s36, %s461
        $region40: #{tpu_custom_call.1} parent=23 // pred_fallthru
          _
        // Predicated region
        $region41: #{tpu_custom_call.1} parent=23 // pred_check
          %p463 = pneg %p256
        $region42: #{tpu_custom_call.1} parent=23 // pred_check_branch
          %465 = sbr.rel (%p463) target = $region44
        $region43: #{tpu_custom_call.1} parent=23 // pred_region
          %s466 = smul.u32 %s34, 4
          %s467 = sadd.s32 %s466, %s35
          %s468 = sld [smem:[#allocation6 + %s467]]
          %s469 = sld [smem:[#allocation5 + %s467]]
          %s470 = smul.u32 %s36, %s469
          %s471 = smul.u32 8, %s470
          %p472 = scmp.lt.s32.totalorder %s468, 3
          %s473 = scalar_select %p472, %s468, 3
          %p474 = scmp.lt.s32.totalorder %s471, 7
          %s475 = scalar_select %p474, %s471, 7
          %s476 = smul.addr %s473, 8
          %s477 = sadd.s32 %s475, %s476
          %s478 = smul.addr %s477, 4
          %s479 = scalar_lea.vmem %s7, %s478
          %s480 = smul.u32 %s34, 4
          %s481 = sadd.s32 %s480, %s35
          %s482 = sld [smem:[#allocation6 + %s481]]
          %s483 = sld [smem:[#allocation5 + %s481]]
          %s484 = smul.u32 %s36, %s483
          %s485 = smul.u32 8, %s484
        $region44: #{tpu_custom_call.1} parent=23 // pred_fallthru
          _
        // Predicated region
        $region45: #{tpu_custom_call.1} parent=23 // pred_check
          %p486 = pneg %p288
        $region46: #{tpu_custom_call.1} parent=23 // pred_check_branch
          %488 = sbr.rel (%p486) target = $region48
        $region47: #{tpu_custom_call.1} parent=23 // pred_region
          %s489 = smul.u32 %s34, 4
          %s490 = sadd.s32 %s489, %s35
          %s491 = sld [smem:[#allocation6 + %s490]]
          %p492 = scmp.lt.s32.totalorder %s491, 3
          %s493 = scalar_select %p492, %s491, 3
          %s494 = scalar_lea.vmem %s8, %s493
          %s495 = smul.u32 %s34, 4
          %s496 = sadd.s32 %s495, %s35
          %s497 = sld [smem:[#allocation6 + %s496]]
        $region48: #{tpu_custom_call.1} parent=23 // pred_fallthru
          _
      $region24: #{tpu_custom_call.1} parent=5 // pred_fallthru
        _
      %p498 = scmp.le.s32.totalorder 1, %s27
      %p499 = scmp.lt.s32.totalorder %s27, 5
      %p500 = pnand %p498, %p499
      %p501 = pneg %p500
      // Predicated region
      $region49: #{tpu_custom_call.1} parent=5 // pred_check
        _
      $region50: #{tpu_custom_call.1} parent=5 // pred_check_branch
        %503 = sbr.rel (%p500) target = $region52
      $region51: #{tpu_custom_call.1} parent=5 // pred_region
        %s504 = ssub.s32 %s27, 1
        %s505 = smul.u32 2, %s37
        %p506 = scmp.lt.s32.totalorder %s505, 1
        %s507 = scalar_select %p506, %s505, 1
        %s508 = smul.addr %s507, 4
        %s509 = scalar_lea.vmem %s2, %s508
        %p510 = pneg %p72
        %p511 = pneg %p69
        %s512 = smul.u32 %s37, 4
        %s513 = sadd.s32 %s512, %s38
        %s514 = sld [smem:[#allocation6 + %s513]]
        %s515 = sld [smem:[#allocation5 + %s513]]
        %s516 = smul.u32 %s39, %s515
        %p517 = scmp.lt.s32.totalorder %s514, 3
        %s518 = scalar_select %p517, %s514, 3
        %p519 = scmp.lt.s32.totalorder %s516, 0
        %s520 = scalar_select %p519, %s516, 0
        %s521 = smul.addr %s518, 4
        %s522 = sadd.s32 %s520, %s521
        %s523 = smul.addr %s522, 4
        %s524 = scalar_lea.vmem %s3, %s523
        %p525 = pneg %p110
        %p526 = pneg %p107
        %s527 = smul.u32 %s37, 4
        %s528 = sadd.s32 %s527, %s38
        %s529 = sld [smem:[#allocation6 + %s528]]
        %s530 = sld [smem:[#allocation5 + %s528]]
        %s531 = smul.u32 %s39, %s530
        %p532 = scmp.lt.s32.totalorder %s529, 3
        %s533 = scalar_select %p532, %s529, 3
        %p534 = scmp.lt.s32.totalorder %s531, 0
        %s535 = scalar_select %p534, %s531, 0
        %s536 = sadd.s32 %s535, %s533
        %s537 = scalar_lea.vmem %s4, %s536
        %p538 = pneg %p148
        %p539 = pneg %p145
        %s540 = smul.u32 %s37, 4
        %s541 = sadd.s32 %s540, %s38
        %s542 = sld [smem:[#allocation6 + %s541]]
        %s543 = sld [smem:[#allocation5 + %s541]]
        %s544 = smul.u32 %s39, %s543
        %p545 = scmp.lt.s32.totalorder %s542, 3
        %s546 = scalar_select %p545, %s542, 3
        %p547 = scmp.lt.s32.totalorder %s544, 0
        %s548 = scalar_select %p547, %s544, 0
        %s549 = smul.addr %s546, 4
        %s550 = sadd.s32 %s548, %s549
        %s551 = smul.addr %s550, 4
        %s552 = scalar_lea.vmem %s5, %s551
        %p553 = pneg %p186
        %p554 = pneg %p183
        %s555 = smul.u32 %s37, 4
        %s556 = sadd.s32 %s555, %s38
        %s557 = sld [smem:[#allocation6 + %s556]]
        %s558 = sld [smem:[#allocation5 + %s556]]
        %s559 = smul.u32 %s39, %s558
        %p560 = scmp.lt.s32.totalorder %s557, 3
        %s561 = scalar_select %p560, %s557, 3
        %p562 = scmp.lt.s32.totalorder %s559, 0
        %s563 = scalar_select %p562, %s559, 0
        %s564 = sadd.s32 %s563, %s561
        %s565 = scalar_lea.vmem %s6, %s564
        %p566 = pneg %p224
        %p567 = pneg %p221
        %s568 = smul.u32 %s37, 4
        %s569 = sadd.s32 %s568, %s38
        %s570 = sld [smem:[#allocation6 + %s569]]
        %s571 = sld [smem:[#allocation5 + %s569]]
        %s572 = smul.u32 %s39, %s571
        %s573 = smul.u32 8, %s572
        %p574 = scmp.lt.s32.totalorder %s570, 3
        %s575 = scalar_select %p574, %s570, 3
        %p576 = scmp.lt.s32.totalorder %s573, 7
        %s577 = scalar_select %p576, %s573, 7
        %s578 = smul.addr %s575, 8
        %s579 = sadd.s32 %s577, %s578
        %s580 = smul.addr %s579, 4
        %s581 = scalar_lea.vmem %s7, %s580
        %p582 = pneg %p262
        %p583 = pneg %p259
        %s584 = smul.u32 %s37, 4
        %s585 = sadd.s32 %s584, %s38
        %s586 = sld [smem:[#allocation6 + %s585]]
        %p587 = scmp.lt.s32.totalorder %s586, 3
        %s588 = scalar_select %p587, %s586, 3
        %s589 = scalar_lea.vmem %s8, %s588
        %p590 = pneg %p294
        %p591 = pneg %p291
        %s592 = smul.u32 2, %s37
        %p593 = scmp.lt.s32.totalorder %s592, 1
        %s594 = scalar_select %p593, %s592, 1
        %s595 = smul.addr %s594, 8
        %s596 = scalar_lea.vmem %s9, %s595
        %p597 = pneg %p320
        %p598 = pneg %p317
        %p599 = pneg %p346
        %p600 = pneg %p343
        %s601 = smul.u32 2, %s37
        %p602 = scmp.lt.s32.totalorder %s601, 1
        %s603 = scalar_select %p602, %s601, 1
        %s604 = smul.addr %s603, 4
        %s605 = scalar_lea.vmem %s2, %s604
        %s606 = smul.u32 2, %s37
        %s607 = smul.u32 %s37, 4
        %s608 = sadd.s32 %s607, %s38
        %s609 = sld [smem:[#allocation6 + %s608]]
        %s610 = sld [smem:[#allocation5 + %s608]]
        %s611 = smul.u32 %s39, %s610
        %p612 = scmp.lt.s32.totalorder %s609, 3
        %s613 = scalar_select %p612, %s609, 3
        %p614 = scmp.lt.s32.totalorder %s611, 0
        %s615 = scalar_select %p614, %s611, 0
        %s616 = smul.addr %s613, 4
        %s617 = sadd.s32 %s615, %s616
        %s618 = smul.addr %s617, 4
        %s619 = scalar_lea.vmem %s3, %s618
        %s620 = smul.u32 %s37, 4
        %s621 = sadd.s32 %s620, %s38
        %s622 = sld [smem:[#allocation6 + %s621]]
        %s623 = sld [smem:[#allocation5 + %s621]]
        %s624 = smul.u32 %s39, %s623
        %s625 = smul.u32 %s37, 4
        %s626 = sadd.s32 %s625, %s38
        %s627 = sld [smem:[#allocation6 + %s626]]
        %s628 = sld [smem:[#allocation5 + %s626]]
        %s629 = smul.u32 %s39, %s628
        %p630 = scmp.lt.s32.totalorder %s627, 3
        %s631 = scalar_select %p630, %s627, 3
        %p632 = scmp.lt.s32.totalorder %s629, 0
        %s633 = scalar_select %p632, %s629, 0
        %s634 = sadd.s32 %s633, %s631
        %s635 = scalar_lea.vmem %s4, %s634
        %s636 = smul.u32 %s37, 4
        %s637 = sadd.s32 %s636, %s38
        %s638 = sld [smem:[#allocation6 + %s637]]
        %s639 = sld [smem:[#allocation5 + %s637]]
        %s640 = smul.u32 %s39, %s639
        %s641 = smul.u32 %s37, 4
        %s642 = sadd.s32 %s641, %s38
        %s643 = sld [smem:[#allocation6 + %s642]]
        %s644 = sld [smem:[#allocation5 + %s642]]
        %s645 = smul.u32 %s39, %s644
        %p646 = scmp.lt.s32.totalorder %s643, 3
        %s647 = scalar_select %p646, %s643, 3
        %p648 = scmp.lt.s32.totalorder %s645, 0
        %s649 = scalar_select %p648, %s645, 0
        %s650 = smul.addr %s647, 4
        %s651 = sadd.s32 %s649, %s650
        %s652 = smul.addr %s651, 4
        %s653 = scalar_lea.vmem %s5, %s652
        %s654 = smul.u32 %s37, 4
        %s655 = sadd.s32 %s654, %s38
        %s656 = sld [smem:[#allocation6 + %s655]]
        %s657 = sld [smem:[#allocation5 + %s655]]
        %s658 = smul.u32 %s39, %s657
        %s659 = smul.u32 %s37, 4
        %s660 = sadd.s32 %s659, %s38
        %s661 = sld [smem:[#allocation6 + %s660]]
        %s662 = sld [smem:[#allocation5 + %s660]]
        %s663 = smul.u32 %s39, %s662
        %p664 = scmp.lt.s32.totalorder %s661, 3
        %s665 = scalar_select %p664, %s661, 3
        %p666 = scmp.lt.s32.totalorder %s663, 0
        %s667 = scalar_select %p666, %s663, 0
        %s668 = sadd.s32 %s667, %s665
        %s669 = scalar_lea.vmem %s6, %s668
        %s670 = smul.u32 %s37, 4
        %s671 = sadd.s32 %s670, %s38
        %s672 = sld [smem:[#allocation6 + %s671]]
        %s673 = sld [smem:[#allocation5 + %s671]]
        %s674 = smul.u32 %s39, %s673
        %s675 = smul.u32 %s37, 4
        %s676 = sadd.s32 %s675, %s38
        %s677 = sld [smem:[#allocation6 + %s676]]
        %s678 = sld [smem:[#allocation5 + %s676]]
        %s679 = smul.u32 %s39, %s678
        %s680 = smul.u32 8, %s679
        %p681 = scmp.lt.s32.totalorder %s677, 3
        %s682 = scalar_select %p681, %s677, 3
        %p683 = scmp.lt.s32.totalorder %s680, 7
        %s684 = scalar_select %p683, %s680, 7
        %s685 = smul.addr %s682, 8
        %s686 = sadd.s32 %s684, %s685
        %s687 = smul.addr %s686, 4
        %s688 = scalar_lea.vmem %s7, %s687
        %s689 = smul.u32 %s37, 4
        %s690 = sadd.s32 %s689, %s38
        %s691 = sld [smem:[#allocation6 + %s690]]
        %s692 = sld [smem:[#allocation5 + %s690]]
        %s693 = smul.u32 %s39, %s692
        %s694 = smul.u32 8, %s693
        %s695 = smul.u32 %s37, 4
        %s696 = sadd.s32 %s695, %s38
        %s697 = sld [smem:[#allocation6 + %s696]]
        %p698 = scmp.lt.s32.totalorder %s697, 3
        %s699 = scalar_select %p698, %s697, 3
        %s700 = scalar_lea.vmem %s8, %s699
        %s701 = smul.u32 %s37, 4
        %s702 = sadd.s32 %s701, %s38
        %s703 = sld [smem:[#allocation6 + %s702]]
        %s704 = smul.u32 2, %s37
        %p705 = scmp.lt.s32.totalorder %s704, 1
        %s706 = scalar_select %p705, %s704, 1
        %s707 = smul.addr %s706, 8
        %s708 = scalar_lea.vmem %s9, %s707
        %s709 = smul.u32 2, %s37
        %s710 = smul.u32 2, %s37
        %p712 = scmp.eq.s32.totalorder %s38, 0
        %p713 = scmp.eq.s32.totalorder %s39, 0
        %p714 = pnand %p712, %p713
        %p715 = pneg %p714
        // Predicated region
        $region53: #{tpu_custom_call.1} parent=51 // pred_check
          _
        $region54: #{tpu_custom_call.1} parent=51 // pred_check_branch
          %717 = sbr.rel (%p714) target = $region56
        $region55: #{tpu_custom_call.1} parent=51 // pred_region
          %vm718 = vcmask 261120
          %719 = vst.msk [vmem:[#allocation2] sm:$0xff] %vm718, 0.0
          %720 = vst.msk [vmem:[#allocation2 + $0x8] sm:$0xff] %vm718, 0.0
        $region56: #{tpu_custom_call.1} parent=51 // pred_fallthru
          _
        %s721 = smul.u32 %s37, 4
        %s722 = sadd.s32 %s721, %s38
        %s723 = sld [smem:[#allocation5 + %s722]]
        %p724 = scmp.gt.s32.totalorder %s723, 0
        // Predicated region
        $region57: #{tpu_custom_call.1} parent=51 // pred_check
          %p725 = pneg %p724
        $region58: #{tpu_custom_call.1} parent=51 // pred_check_branch
          %727 = sbr.rel (%p725) target = $region60
        $region59: #{tpu_custom_call.1} parent=51 // pred_region
          // Predicated region
          $region61: #{tpu_custom_call.1} parent=59 // pred_check
            %p728 = pneg %p713
          $region62: #{tpu_custom_call.1} parent=59 // pred_check_branch
            %730 = sbr.rel (%p728) target = $region64
          $region63: #{tpu_custom_call.1} parent=59 // pred_region
            %v731 = vld [vmem:[%s708] sm:$0xff]
            %v732 = vld [vmem:[%s708 + $0x8] sm:$0xff]
            %v733 = vlaneseq
            %v734 = vand.u32 %v733, 127
            %v735 = vstv %s38
            %vm736 = vcmp.eq.s32.totalorder %v734, %v735
            %v737 = vsel %vm736, %v731, 0.0
            %v738 = vsel %vm736, %v732, 0.0
            %vm739 = vcmask 31744
            %v740 = vsel %vm739, %v737, 0.0
            %741 = vadd.xlane.f32.xlu0 %v740
            %v742 = vpop.xlane.xlu0 %741
            %v743 = vsel %vm739, %v738, 0.0
            %744 = vadd.xlane.f32.xlu0 %v743
            %v745 = vpop.xlane.xlu0 %744
            %vm746 = vcmask 7168
            %747 = vst.msk [vmem:[#allocation3] sm:$0xff] %vm746, %v742
            %748 = vst.msk [vmem:[#allocation3 + $0x8] sm:$0xff] %vm746, %v745
          $region64: #{tpu_custom_call.1} parent=59 // pred_fallthru
            _
          %v749 = vld [vmem:[#allocation3] sm:$0xff]
          %v750 = vld [vmem:[#allocation3 + $0x8] sm:$0xff]
          %v751 = vld [vmem:[%s605] sm:$0xf]
          %v752 = vld [vmem:[%s605 + $0x4] sm:$0xf]
          %v753 = vld [vmem:[%s619] sm:$0xf]
          %v754 = vld [vmem:[%s619 + $0x4] sm:$0xf]
          %v755 = vld [vmem:[%s619 + $0x8] sm:$0xf]
          %v756 = vld [vmem:[%s619 + $0xc] sm:$0xf]
          %v757 = vld [vmem:[%s635] sm:$0x1]
          %v759 = vlaneseq
          %v760 = vshrl.u32 %v759, 7
          %v761 = vsub.s32 0, %v760
          %v762 = vrot.slane %v757, %v761
          %v766 = vunpack.c.l.b16 %v751
          %v767 = vunpack.c.l.b16 %v752
          %v768 = vpack.c.b16 %v767, %v766
          %v773 = vunpack.c.l.b16 %v753
          %v774 = vunpack.c.l.b16 %v754
          %v775 = vunpack.c.l.b16 %v755
          %v776 = vunpack.c.l.b16 %v756
          %v777 = vpack.c.b16 %v774, %v773
          %v778 = vpack.c.b16 %v776, %v775
          %vm781 = vcmask 261120
          %v783 = vsel %vm781, %v768, 0
          %785 = vmatprep.subr.bf16.mxu0 0
          %786 = vmatpush1.bf16.msra.mxu0 %v777
          %787 = vmatprep.subr.bf16.mxu0 0
          %788 = vmatpush1.bf16.msra.mxu0 %v778
          %789 = vmatprep.subr.bf16.mxu0 0
          %790 = vmatpush1.bf16.msra.mxu0 0
          %791 = vmatprep.subr.bf16.mxu0 0
          %792 = vmatpush1.bf16.msra.mxu0 0
          %793 = vmatprep.subr.bf16.mxu0 0
          %794 = vmatpush1.bf16.msra.mxu0 0
          %795 = vmatprep.subr.bf16.mxu0 0
          %796 = vmatpush1.bf16.msra.mxu0 0
          %797 = vmatprep.subr.bf16.mxu0 0
          %798 = vmatpush1.bf16.msra.mxu0 0
          %799 = vmatprep.subr.bf16.mxu0 0
          %800 = vmatpush1.bf16.msra.mxu0 0
          %801 = vmatprep.subr.bf16.mxu0 0
          %802 = vmatpush1.bf16.msra.mxu0 0
          %803 = vmatprep.subr.bf16.mxu0 0
          %804 = vmatpush1.bf16.msra.mxu0 0
          %805 = vmatprep.subr.bf16.mxu0 0
          %806 = vmatpush1.bf16.msra.mxu0 0
          %807 = vmatprep.subr.bf16.mxu0 0
          %808 = vmatpush1.bf16.msra.mxu0 0
          %809 = vmatprep.subr.bf16.mxu0 0
          %810 = vmatpush1.bf16.msra.mxu0 0
          %811 = vmatprep.subr.bf16.mxu0 0
          %812 = vmatpush1.bf16.msra.mxu0 0
          %813 = vmatprep.subr.bf16.mxu0 0
          %814 = vmatpush1.bf16.msra.mxu0 0
          %815 = vmatprep.subr.bf16.mxu0 0
          %816 = vmatpush1.bf16.msra.mxu0 0
          %817 = vmatprep.mubr.bf16.mxu0 0
          %818 = vmatmul.mubr.bf16.gmra.mrb[0].mxu0 %v783
          %v819 = vpop.f32.mrb[0].mxu0
          %v820 = vadd.f32 %v762, %v819
          %v821 = vpop.f32.mrb[0].mxu0
          %v822 = vpop.f32.mrb[0].mxu0
          %v823 = vadd.f32 %v762, %v822
          %v824 = vpop.f32.mrb[0].mxu0
          %825 = vdwg.mxu0
          %v826 = vld [vmem:[%s653] sm:$0xf]
          %v827 = vld [vmem:[%s653 + $0x4] sm:$0xf]
          %v828 = vld [vmem:[%s653 + $0x8] sm:$0xf]
          %v829 = vld [vmem:[%s653 + $0xc] sm:$0xf]
          %v830 = vld [vmem:[%s669] sm:$0x1]
          %v832 = vlaneseq
          %v833 = vshrl.u32 %v832, 7
          %v834 = vsub.s32 0, %v833
          %v835 = vrot.slane %v830, %v834
          %v841 = vunpack.c.l.b16 %v826
          %v842 = vunpack.c.l.b16 %v827
          %v843 = vunpack.c.l.b16 %v828
          %v844 = vunpack.c.l.b16 %v829
          %v845 = vpack.c.b16 %v842, %v841
          %v846 = vpack.c.b16 %v844, %v843
          %849 = vmatprep.subr.bf16.mxu0 0
          %850 = vmatpush1.bf16.msra.mxu0 %v845
          %851 = vmatprep.subr.bf16.mxu0 0
          %852 = vmatpush1.bf16.msra.mxu0 %v846
          %853 = vmatprep.subr.bf16.mxu0 0
          %854 = vmatpush1.bf16.msra.mxu0 0
          %855 = vmatprep.subr.bf16.mxu0 0
          %856 = vmatpush1.bf16.msra.mxu0 0
          %857 = vmatprep.subr.bf16.mxu0 0
          %858 = vmatpush1.bf16.msra.mxu0 0
          %859 = vmatprep.subr.bf16.mxu0 0
          %860 = vmatpush1.bf16.msra.mxu0 0
          %861 = vmatprep.subr.bf16.mxu0 0
          %862 = vmatpush1.bf16.msra.mxu0 0
          %863 = vmatprep.subr.bf16.mxu0 0
          %864 = vmatpush1.bf16.msra.mxu0 0
          %865 = vmatprep.subr.bf16.mxu0 0
          %866 = vmatpush1.bf16.msra.mxu0 0
          %867 = vmatprep.subr.bf16.mxu0 0
          %868 = vmatpush1.bf16.msra.mxu0 0
          %869 = vmatprep.subr.bf16.mxu0 0
          %870 = vmatpush1.bf16.msra.mxu0 0
          %871 = vmatprep.subr.bf16.mxu0 0
          %872 = vmatpush1.bf16.msra.mxu0 0
          %873 = vmatprep.subr.bf16.mxu0 0
          %874 = vmatpush1.bf16.msra.mxu0 0
          %875 = vmatprep.subr.bf16.mxu0 0
          %876 = vmatpush1.bf16.msra.mxu0 0
          %877 = vmatprep.subr.bf16.mxu0 0
          %878 = vmatpush1.bf16.msra.mxu0 0
          %879 = vmatprep.subr.bf16.mxu0 0
          %880 = vmatpush1.bf16.msra.mxu0 0
          %881 = vmatprep.mubr.bf16.mxu0 0
          %882 = vmatmul.mubr.bf16.gmra.mrb[0].mxu0 %v783
          %v883 = vpop.f32.mrb[0].mxu0
          %v884 = vadd.f32 %v835, %v883
          %v885 = vpop.f32.mrb[0].mxu0
          %v886 = vpop.f32.mrb[0].mxu0
          %v887 = vadd.f32 %v835, %v886
          %v888 = vpop.f32.mrb[0].mxu0
          %889 = vdwg.mxu0
          %v890 = vxor.u32 %v820, 2147483648
          %v891 = vxor.u32 %v823, 2147483648
          %v892 = vmul.f32 %v890, 1.442695
          %v893 = vpow.pop %v892
          %v894 = vmul.f32 %v891, 1.442695
          %v895 = vpow.pop %v894
          %v896 = vadd.f32 %v893, 1.0
          %v897 = vadd.f32 %v895, 1.0
          %v898 = vrcp.pop %v896
          %v899 = vmul.f32 1.0, %v898
          %v900 = vrcp.pop %v897
          %v901 = vmul.f32 1.0, %v900
          %v902 = vmul.f32 %v820, %v899
          %v903 = vmul.f32 %v823, %v901
          %905 = vset.pattern.permute.xlu0 0
          %906 = vperm.xlu0 %905, %v749
          %v907 = vpop.permute.xlu0 %906
          %910 = vset.pattern.permute.xlu0 0
          %911 = vperm.xlu0 %910, %v750
          %v912 = vpop.permute.xlu0 %911
          %v914 = vmul.f32 %v907, %v902
          %v915 = vmul.f32 %v912, %v903
          %v916 = vmul.f32 %v914, %v884
          %v917 = vmul.f32 %v915, %v887
          %v918 = vld [vmem:[#allocation2] sm:$0xff]
          %v919 = vld [vmem:[#allocation2 + $0x8] sm:$0xff]
          %v920 = vpack.c.bf16 %v917, %v916
          %v921 = vld [vmem:[%s688] sm:$0xf]
          %v922 = vld [vmem:[%s688 + $0x4] sm:$0xf]
          %v923 = vld [vmem:[%s688 + $0x8] sm:$0xf]
          %v924 = vld [vmem:[%s688 + $0xc] sm:$0xf]
          %v925 = vld [vmem:[%s688 + $0x10] sm:$0xf]
          %v926 = vld [vmem:[%s688 + $0x14] sm:$0xf]
          %v927 = vld [vmem:[%s688 + $0x18] sm:$0xf]
          %v928 = vld [vmem:[%s688 + $0x1c] sm:$0xf]
          %v937 = vunpack.c.l.b16 %v921
          %v938 = vunpack.c.l.b16 %v922
          %v939 = vunpack.c.l.b16 %v923
          %v940 = vunpack.c.l.b16 %v924
          %v941 = vunpack.c.l.b16 %v925
          %v942 = vunpack.c.l.b16 %v926
          %v943 = vunpack.c.l.b16 %v927
          %v944 = vunpack.c.l.b16 %v928
          %v945 = vpack.c.b16 %v938, %v937
          %v946 = vpack.c.b16 %v940, %v939
          %v947 = vpack.c.b16 %v942, %v941
          %v948 = vpack.c.b16 %v944, %v943
          %vm953 = vcmask 523264
          %v955 = vsel %vm953, %v920, 0
          %957 = vmatprep.subr.bf16.mxu0 0
          %958 = vmatpush1.bf16.msra.mxu0 %v945
          %959 = vmatprep.subr.bf16.mxu0 0
          %960 = vmatpush1.bf16.msra.mxu0 %v946
          %961 = vmatprep.subr.bf16.mxu0 0
          %962 = vmatpush1.bf16.msra.mxu0 %v947
          %963 = vmatprep.subr.bf16.mxu0 0
          %964 = vmatpush1.bf16.msra.mxu0 %v948
          %965 = vmatprep.subr.bf16.mxu0 0
          %966 = vmatpush1.bf16.msra.mxu0 0
          %967 = vmatprep.subr.bf16.mxu0 0
          %968 = vmatpush1.bf16.msra.mxu0 0
          %969 = vmatprep.subr.bf16.mxu0 0
          %970 = vmatpush1.bf16.msra.mxu0 0
          %971 = vmatprep.subr.bf16.mxu0 0
          %972 = vmatpush1.bf16.msra.mxu0 0
          %973 = vmatprep.subr.bf16.mxu0 0
          %974 = vmatpush1.bf16.msra.mxu0 0
          %975 = vmatprep.subr.bf16.mxu0 0
          %976 = vmatpush1.bf16.msra.mxu0 0
          %977 = vmatprep.subr.bf16.mxu0 0
          %978 = vmatpush1.bf16.msra.mxu0 0
          %979 = vmatprep.subr.bf16.mxu0 0
          %980 = vmatpush1.bf16.msra.mxu0 0
          %981 = vmatprep.subr.bf16.mxu0 0
          %982 = vmatpush1.bf16.msra.mxu0 0
          %983 = vmatprep.subr.bf16.mxu0 0
          %984 = vmatpush1.bf16.msra.mxu0 0
          %985 = vmatprep.subr.bf16.mxu0 0
          %986 = vmatpush1.bf16.msra.mxu0 0
          %987 = vmatprep.subr.bf16.mxu0 0
          %988 = vmatpush1.bf16.msra.mxu0 0
          %989 = vmatprep.mubr.bf16.mxu0 0
          %990 = vmatmul.mubr.bf16.gmra.mrb[0].mxu0 %v955
          %v991 = vpop.f32.mrb[0].mxu0
          %v992 = vadd.f32 0.0, %v991
          %v993 = vpop.f32.mrb[0].mxu0
          %v994 = vpop.f32.mrb[0].mxu0
          %v995 = vadd.f32 0.0, %v994
          %v996 = vpop.f32.mrb[0].mxu0
          %997 = vdwg.mxu0
          %v998 = vadd.f32 %v918, %v992
          %v999 = vadd.f32 %v919, %v995
          %1000 = vst.msk [vmem:[#allocation2] sm:$0xff] %vm781, %v998
          %1001 = vst.msk [vmem:[#allocation2 + $0x8] sm:$0xff] %vm781, %v999
          // Predicated region
          $region65: #{tpu_custom_call.1} parent=59 // pred_check
            %p1002 = pneg %p713
          $region66: #{tpu_custom_call.1} parent=59 // pred_check_branch
            %1004 = sbr.rel (%p1002) target = $region68
          $region67: #{tpu_custom_call.1} parent=59 // pred_region
            %v1005 = vld [vmem:[#allocation2] sm:$0xff]
            %v1006 = vld [vmem:[#allocation2 + $0x8] sm:$0xff]
            %v1007 = vld [vmem:[%s700] sm:$0x1]
            %v1009 = vlaneseq
            %v1010 = vshrl.u32 %v1009, 7
            %v1011 = vsub.s32 0, %v1010
            %v1012 = vrot.slane %v1007, %v1011
            %v1014 = vmul.f32 %v907, %v1012
            %v1015 = vmul.f32 %v912, %v1012
            %v1016 = vadd.f32 %v1005, %v1014
            %v1017 = vadd.f32 %v1006, %v1015
            %1018 = vst.msk [vmem:[#allocation2] sm:$0xff] %vm781, %v1016
            %1019 = vst.msk [vmem:[#allocation2 + $0x8] sm:$0xff] %vm781, %v1017
          $region68: #{tpu_custom_call.1} parent=59 // pred_fallthru
            _
        $region60: #{tpu_custom_call.1} parent=51 // pred_fallthru
          _
        %p1020 = scmp.eq.s32.totalorder %s38, 3
        %p1021 = pnand %p1020, %p713
        %p1022 = pneg %p1021
        // Predicated region
        $region69: #{tpu_custom_call.1} parent=51 // pred_check
          _
        $region70: #{tpu_custom_call.1} parent=51 // pred_check_branch
          %1024 = sbr.rel (%p1021) target = $region72
        $region71: #{tpu_custom_call.1} parent=51 // pred_region
          %v1025 = vld [vmem:[#allocation2] sm:$0xff]
          %v1026 = vld [vmem:[#allocation2 + $0x8] sm:$0xff]
          %vm1027 = vcmask 261120
          %1028 = vst.msk [vmem:[#allocation7] sm:$0xff] %vm1027, %v1025
          %1029 = vst.msk [vmem:[#allocation7 + $0x8] sm:$0xff] %vm1027, %v1026
        $region72: #{tpu_custom_call.1} parent=51 // pred_fallthru
          _
        // Predicated region
        $region73: #{tpu_custom_call.1} parent=51 // pred_check
          %p1030 = pneg %p343
        $region74: #{tpu_custom_call.1} parent=51 // pred_check_branch
          %1032 = sbr.rel (%p1030) target = $region76
        $region75: #{tpu_custom_call.1} parent=51 // pred_region
          %s1033 = smul.u32 2, %s37
          %s1035 = ssub.s32 256, 256
          %1036 = vsyncadd [#allocation8], %s1035
          %s1037 = smul.addr %s1033, 128
          %s1038 = scalar_lea.hbm %s10, %s1037
          %s1039 = sshll.u32 [#allocation7], 4
          %s1040 = int_to_ptr.vmem [resolvable:$true] %s1039
          %1045 = dma.vmem_to_hbm [thread:$0]  %s1040, 256, %s1038, [#allocation8], 128, 128, 8
        $region76: #{tpu_custom_call.1} parent=51 // pred_fallthru
          _
        // Predicated region
        $region77: #{tpu_custom_call.1} parent=51 // pred_check
          %p1046 = pneg %p343
        $region78: #{tpu_custom_call.1} parent=51 // pred_check_branch
          %1048 = sbr.rel (%p1046) target = $region80
        $region79: #{tpu_custom_call.1} parent=51 // pred_region
          %1049 = dma.done [#allocation8], 256
        $region80: #{tpu_custom_call.1} parent=51 // pred_fallthru
          _
      $region52: #{tpu_custom_call.1} parent=5 // pred_fallthru
        _
      %p1050 = scmp.le.s32.totalorder 2, %s27
      // Predicated region
      $region81: #{tpu_custom_call.1} parent=5 // pred_check
        %p1051 = pneg %p1050
      $region82: #{tpu_custom_call.1} parent=5 // pred_check_branch
        %1053 = sbr.rel (%p1051) target = $region84
      $region83: #{tpu_custom_call.1} parent=5 // pred_region
        %s1054 = ssub.s32 %s27, 2
      $region84: #{tpu_custom_call.1} parent=5 // pred_fallthru
        _
    $region6: #{tpu_custom_call.1} parent=1 // loop_footer
      %s31 = sadd.s32 1, %s27
    $region7: #{tpu_custom_call.1} parent=1 // loop_footer_branch
      %26 = sbr.rel target = $region3
    $region8: #{tpu_custom_call.1} parent=1 // loop_exit
      _
    %1055 = vsyncpa [#allocation8], 1
    %s1056 = scalar_lea.sflag [#allocation8], 1
    %1057 = vsyncpa %s1056, 1

</llo_original>
